<compile_context>
chip_gen: v7x
topology: tpu7x:2x2x1
jax: 0.10.0
libtpu: 0.0.40
codegen_flags: <defaults>
</compile_context>

<pallas_src>
import jax
import jax.numpy as jnp
from jax.experimental import pallas as pl
from jax.experimental.pallas import tpu as pltpu


def _normalize_kernel(scale_ref, bias_ref, x_ref, o_ref):
    # scale_ref/bias_ref: (TR, 1) f32 columns (one value per N*C row).
    # x_ref/o_ref:        (TR, TL) tiles of the (N*C, H*W) slab.
    x = x_ref[...].astype(jnp.float32)
    o_ref[...] = (x * scale_ref[...] + bias_ref[...]).astype(o_ref.dtype)


def _round_down(v, m):
    return (v // m) * m


def _choose_tiles(R, L, bytes_per_elem, row_align, target_block_bytes):
    """Pick (TR, TL) tiles for the (R, L) slab.

    TR is either R or a positive multiple of `row_align`; TL is either L or a
    positive multiple of 128 (>= 1024 lanes), so every BlockSpec satisfies the
    TPU min-tile rule.  Boundary blocks are handled by cdiv + masking.
    """
    row_bytes = L * bytes_per_elem
    if row_bytes <= target_block_bytes:
        # Full rows per block: each block is one contiguous HBM slab.
        TL = L
        TR = min(R, max(1, target_block_bytes // row_bytes))
        if R >= 2 * row_align:
            TR = min(TR, (R + 1) // 2)  # >= 2 row tiles -> both v7x TCs busy
        TR = _round_down(TR, row_align)
        if TR == 0:
            TR = row_align if R >= row_align else R
    else:
        # One row alone exceeds the budget: tile the lane axis too.
        TR = row_align if R >= row_align else R
        lanes = max(1024, target_block_bytes // max(1, TR * bytes_per_elem))
        TL = min(_round_down(lanes, 128), _round_down(L, 128))
        if TL == 0:
            TL = L
    return TR, TL


def normalize(x, mean, std, *, out_dtype=None,
              target_block_bytes=2 * 1024 * 1024):
    """(x / 255 - mean) / std over NCHW with per-channel mean/std.

    x:    (N, C, H, W), any real dtype (float32, bfloat16, uint8, ...).
    mean: (C,) float
    std:  (C,) float
    out_dtype: defaults to x.dtype for float inputs, float32 otherwise.
    """
    N, C, H, W = x.shape
    assert mean.shape == (C,) and std.shape == (C,)

    if out_dtype is None:
        out_dtype = x.dtype if jnp.issubdtype(x.dtype, jnp.floating) else jnp.float32
    out_dtype = jnp.dtype(out_dtype)

    R = N * C
    L = H * W

    # Fold the normalization into one affine (precomputed once, in f32).
    mean_f = mean.astype(jnp.float32)
    std_f = std.astype(jnp.float32)
    scale = 1.0 / (255.0 * std_f)
    bias = -mean_f / std_f
    # Row r of the flattened (N*C, H*W) slab uses channel r % C.
    scale_rows = jnp.tile(scale, N).reshape(R, 1)
    bias_rows = jnp.tile(bias, N).reshape(R, 1)

    # Contiguous reshape — no data movement; H*W becomes the lane axis.
    x2 = x.reshape(R, L)

    in_bytes = jnp.dtype(x.dtype).itemsize
    out_bytes = out_dtype.itemsize
    # Sublane alignment for row tiles: 8 (f32) / 16 (bf16) / 32 (u8).
    row_align = max(32 // in_bytes, 32 // out_bytes, 8)

    TR, TL = _choose_tiles(R, L, in_bytes + out_bytes, row_align,
                           target_block_bytes)
    grid = (pl.cdiv(R, TR), pl.cdiv(L, TL))

    # Donate x into the output when dtypes match (halves peak HBM footprint).
    aliases = {2: 0} if jnp.dtype(x.dtype) == out_dtype else {}

    out2 = pl.pallas_call(
        _normalize_kernel,
        out_shape=jax.ShapeDtypeStruct((R, L), out_dtype),
        grid=grid,
        in_specs=[
            pl.BlockSpec((TR, 1), lambda i, j: (i, 0)),    # per-row scale
            pl.BlockSpec((TR, 1), lambda i, j: (i, 0)),    # per-row bias
            pl.BlockSpec((TR, TL), lambda i, j: (i, j)),   # input tile
        ],
        out_specs=pl.BlockSpec((TR, TL), lambda i, j: (i, j)),
        compiler_params=pltpu.CompilerParams(
            dimension_semantics=("parallel", "parallel"),
        ),
        cost_estimate=pl.CostEstimate(
            flops=2 * R * L,
            transcendentals=0,
            bytes_accessed=R * L * (in_bytes + out_bytes) + 2 * R * 4,
        ),
        input_output_aliases=aliases,
    )(scale_rows, bias_rows, x2)

    return out2.reshape(N, C, H, W)


def normalize_ref(x, mean, std):
    """Pure-JAX reference mirroring the PyTorch forward."""
    xf = x.astype(jnp.float32) / 255.0
    m = mean.reshape(1, -1, 1, 1).astype(jnp.float32)
    s = std.reshape(1, -1, 1, 1).astype(jnp.float32)
    return (xf - m) / s


if __name__ == "__main__":
    key = jax.random.PRNGKey(0)
    N, C, H, W = 2, 3, 16, 16  # module hard-codes 3 channels

    mean = jnp.array([0.485, 0.456, 0.406], dtype=jnp.float32)
    std = jnp.array([0.229, 0.224, 0.225], dtype=jnp.float32)

    # float32 pixels in [0, 255] (matches the PyTorch module's usual usage).
    x = jax.random.uniform(key, (N, C, H, W), dtype=jnp.float32) * 255.0
    out = jax.block_until_ready(normalize(x, mean, std))
    ref = normalize_ref(x, mean, std)
    assert out.shape == ref.shape and out.dtype == jnp.float32
    assert jnp.allclose(out, ref, atol=1e-5, rtol=1e-5)

    # uint8 pixels: cast happens inside the kernel (~2.5x less HBM traffic).
    x_u8 = (jax.random.uniform(jax.random.PRNGKey(1), (N, C, H, W)) * 255.0
            ).astype(jnp.uint8)
    out_u8 = jax.block_until_ready(normalize(x_u8, mean, std))
    ref_u8 = normalize_ref(x_u8, mean, std)
    assert out_u8.dtype == jnp.float32
    assert jnp.allclose(out_u8, ref_u8, atol=1e-5, rtol=1e-5)

    print("KERNEL_OK")
</pallas_src>

<mosaic_0001>
module attributes {stable_mosaic.version = 11 : i64} {
  func.func @_normalize_kernel(%arg0: i32, %arg1: i32, %arg2: memref<6x1xf32, #tpu.memory_space<vmem>>, %arg3: memref<6x1xf32, #tpu.memory_space<vmem>>, %arg4: memref<6x256xf32, #tpu.memory_space<vmem>>, %arg5: memref<6x256xf32, #tpu.memory_space<vmem>>) attributes {dimension_semantics = [#tpu.dimension_semantics<parallel>, #tpu.dimension_semantics<parallel>], iteration_bounds = array<i64: 1, 1>, scalar_prefetch = 0 : i64, scratch_operands = 0 : i64, tpu.core_type = #tpu.core_type<tc>, window_params = [{transform_indices = @transform_0, window_bounds = array<i64: 6, 1>}, {transform_indices = @transform_1, window_bounds = array<i64: 6, 1>}, {transform_indices = @transform_2, window_bounds = array<i64: 6, 256>}, {transform_indices = @transform_3, window_bounds = array<i64: 6, 256>}]} {
    %c0 = arith.constant 0 : index
    %c0_0 = arith.constant 0 : index
    %0 = vector.load %arg4[%c0, %c0_0] : memref<6x256xf32, #tpu.memory_space<vmem>>, vector<6x256xf32>
    %c0_1 = arith.constant 0 : index
    %c0_2 = arith.constant 0 : index
    %1 = vector.load %arg2[%c0_1, %c0_2] : memref<6x1xf32, #tpu.memory_space<vmem>>, vector<6x1xf32>
    %2 = vector.broadcast %1 : vector<6x1xf32> to vector<6x256xf32>
    %3 = arith.mulf %0, %2 : vector<6x256xf32>
    %c0_3 = arith.constant 0 : index
    %c0_4 = arith.constant 0 : index
    %4 = vector.load %arg3[%c0_3, %c0_4] : memref<6x1xf32, #tpu.memory_space<vmem>>, vector<6x1xf32>
    %5 = vector.broadcast %4 : vector<6x1xf32> to vector<6x256xf32>
    %6 = arith.addf %3, %5 : vector<6x256xf32>
    %c0_5 = arith.constant 0 : index
    %c0_6 = arith.constant 0 : index
    %7 = vector.load %arg5[%c0_5, %c0_6] : memref<6x256xf32, #tpu.memory_space<vmem>>, vector<6x256xf32>
    tpu.vector_store %arg5[%c0_5, %c0_6], %6 {strides = array<i32>} : memref<6x256xf32, #tpu.memory_space<vmem>>, vector<6x256xf32>,
    return
  }
  func.func @transform_0(%arg0: i32, %arg1: i32) -> (i32, i32) {
    %c0_i32 = arith.constant 0 : i32
    %c0_i32_0 = arith.constant 0 : i32
    return %arg0, %c0_i32 : i32, i32
  }
  func.func @transform_1(%arg0: i32, %arg1: i32) -> (i32, i32) {
    %c0_i32 = arith.constant 0 : i32
    %c0_i32_0 = arith.constant 0 : i32
    return %arg0, %c0_i32 : i32, i32
  }
  func.func @transform_2(%arg0: i32, %arg1: i32) -> (i32, i32) {
    %c0_i32 = arith.constant 0 : i32
    return %arg0, %arg1 : i32, i32
  }
  func.func @transform_3(%arg0: i32, %arg1: i32) -> (i32, i32) {
    %c0_i32 = arith.constant 0 : i32
    return %arg0, %arg1 : i32, i32
  }
}

</mosaic_0001>

<llo_original>
// kernel: tpu_custom_call.1
$region0: #{tpu_custom_call.1}
  #allocation0 [shape = 'u32[]', space=smem, size = 0x4, offset = 0x4, fixed_abs, tag = 'smem constant byte address 0x4 - core index']
  #allocation1 [shape = 'u32[144,128]{1,0:T(1,128)}', space=vmem, size = 0x12000, scoped, tag = 'internal scratch']
  %s0 = inlined_call_operand.vmem [shape: f32[6,1], index: 0, kind: input, shape index: {}]
  %s1 = inlined_call_operand.vmem [shape: f32[6,1], index: 1, kind: input, shape index: {}]
  %s2 = inlined_call_operand.hbm [shape: f32[6,256], index: 2, kind: input, shape index: {}, may-alias: {2,3}]
  %s3 = inlined_call_operand.hbm [shape: f32[6,256], index: 3, kind: output, shape index: {}, may-alias: {2,3}]
  %s4 = sld [smem:[#allocation0]]
  $region26: #{tpu_custom_call.1} parent=0
    _
  %s6 = ssub.s32 1, %s4
  %s7 = scalar_select 0, %s6, %s4
  $region1: #{tpu_custom_call.1} parent=0
    #allocation2 [shape = 'u8[8192]{0}', space=vmem, size = 0x2000, scoped, tag = 'input window, operand 2, single buffered']
    #allocation3 [shape = 's32[1]{0}', space=sflag, size = 0x4, scoped, tag = 'scoped memory for tpu_custom_call.1']
    #allocation4 [shape = 's32[1]{0}', space=sflag, size = 0x4, scoped, tag = 'scoped memory for tpu_custom_call.1']
    #allocation5 [shape = 'u8[8192]{0}', space=vmem, size = 0x2000, scoped, tag = 'output window, operand 0, single buffered']
    %8 = vsyncpa [#allocation3], 0
    %9 = vsyncpa [#allocation4], 0
    // Predicated region
    $region2: #{tpu_custom_call.1} parent=1 // pred_check
      _
    $region3: #{tpu_custom_call.1} parent=1 // pred_check_branch
      %11 = sbr.rel (0) target = $region5
    $region4: #{tpu_custom_call.1} parent=1 // pred_region
      _
    $region5: #{tpu_custom_call.1} parent=1 // pred_fallthru
      _
    // Predicated region
    $region6: #{tpu_custom_call.1} parent=1 // pred_check
      _
    $region7: #{tpu_custom_call.1} parent=1 // pred_check_branch
      %13 = sbr.rel (0) target = $region9
    $region8: #{tpu_custom_call.1} parent=1 // pred_region
      _
    $region9: #{tpu_custom_call.1} parent=1 // pred_fallthru
      _
    // Predicated region
    $region10: #{tpu_custom_call.1} parent=1 // pred_check
      _
    $region11: #{tpu_custom_call.1} parent=1 // pred_check_branch
      %15 = sbr.rel (0) target = $region13
    $region12: #{tpu_custom_call.1} parent=1 // pred_region
      %s17 = ssub.s32 256, 256
      %18 = vsyncadd [#allocation3], %s17
      %s20 = sshll.u32 [#allocation2], 4
      %s21 = int_to_ptr.vmem [resolvable:$true] %s20
      %23 = dma.hbm_to_vmem [thread:$0]  %s2, 256, %s21, [#allocation3]
    $region13: #{tpu_custom_call.1} parent=1 // pred_fallthru
      _
    // Predicated region
    $region14: #{tpu_custom_call.1} parent=1 // pred_check
      _
    $region15: #{tpu_custom_call.1} parent=1 // pred_check_branch
      %25 = sbr.rel (0) target = $region17
    $region16: #{tpu_custom_call.1} parent=1 // pred_region
      %26 = dma.done [#allocation3], 256
    $region17: #{tpu_custom_call.1} parent=1 // pred_fallthru
      _
    %v27 = vld [vmem:[#allocation2] sm:$0x3f]
    %v28 = vld [vmem:[#allocation2 + $0x8] sm:$0x3f]
    %v29 = vld [vmem:[%s0] sm:$0x3f]
    %31 = vset.pattern.permute.xlu0 0
    %32 = vperm.xlu0 %31, %v29
    %v33 = vpop.permute.xlu0 %32
    %v35 = vmul.f32 %v27, %v33
    %v36 = vmul.f32 %v28, %v33
    %v37 = vld [vmem:[%s1] sm:$0x3f]
    %39 = vset.pattern.permute.xlu0 0
    %40 = vperm.xlu0 %39, %v37
    %v41 = vpop.permute.xlu0 %40
    %v43 = vadd.f32 %v35, %v41
    %v44 = vadd.f32 %v36, %v41
    %45 = vst [vmem:[#allocation5] sm:$0x3f] %v43
    %46 = vst [vmem:[#allocation5 + $0x8] sm:$0x3f] %v44
    // Predicated region
    $region18: #{tpu_custom_call.1} parent=1 // pred_check
      _
    $region19: #{tpu_custom_call.1} parent=1 // pred_check_branch
      %48 = sbr.rel (0) target = $region21
    $region20: #{tpu_custom_call.1} parent=1 // pred_region
      %s50 = ssub.s32 256, 256
      %51 = vsyncadd [#allocation4], %s50
      %s53 = sshll.u32 [#allocation5], 4
      %s54 = int_to_ptr.vmem [resolvable:$true] %s53
      %56 = dma.vmem_to_hbm [thread:$0]  %s54, 256, %s3, [#allocation4]
    $region21: #{tpu_custom_call.1} parent=1 // pred_fallthru
      _
    // Predicated region
    $region22: #{tpu_custom_call.1} parent=1 // pred_check
      _
    $region23: #{tpu_custom_call.1} parent=1 // pred_check_branch
      %58 = sbr.rel (0) target = $region25
    $region24: #{tpu_custom_call.1} parent=1 // pred_region
      %59 = dma.done [#allocation4], 256
    $region25: #{tpu_custom_call.1} parent=1 // pred_fallthru
      _
    %60 = vsyncpa [#allocation3], 1
    %61 = vsyncpa [#allocation4], 1

</llo_original>
